<compile_context>
chip_gen: v7x
topology: tpu7x:2x2x1
jax: 0.10.0
libtpu: 0.0.40
codegen_flags: <defaults>
</compile_context>

<pallas_src>
import functools
import math

import jax
import jax.numpy as jnp
from jax import lax
from jax.experimental import pallas as pl
from jax.experimental.pallas import tpu as pltpu


# ------------------------------ tile helpers --------------------------------

def _pick_tile(dim, preferred, multiple):
    """Largest tile <= preferred that divides `dim` and is a multiple of
    `multiple`; falls back to the full dim (a full-extent block is always
    legal)."""
    if dim <= preferred:
        return dim
    t = (preferred // multiple) * multiple
    while t >= multiple:
        if dim % t == 0:
            return t
        t -= multiple
    return dim


def _sublane_multiple(dtype):
    # bf16 packs two rows per sublane; int8/fp8 pack four.
    return {1: 32, 2: 16}.get(jnp.dtype(dtype).itemsize, 8)


def _query_tile_pref():
    """v5e (128-wide MXU, single vector-store slot) prefers tq=128."""
    try:
        kind = jax.devices()[0].device_kind.lower()
        if "v5e" in kind or "v5 lite" in kind or "v5lite" in kind:
            return 128
    except Exception:
        pass
    return 256


# ----------------------------- Pallas kernels -------------------------------

def _linear_kernel(x_ref, w_ref, o_ref):
    """Single-shot (tm, tn) tile: full-Din contraction, fp32 accumulate."""
    o_ref[...] = jnp.dot(x_ref[...], w_ref[...],
                         preferred_element_type=jnp.float32).astype(o_ref.dtype)


def _linear_acc_kernel(x_ref, w_ref, o_ref, acc_ref):
    """(tm, tn) tile accumulated over the k grid axis in fp32."""
    @pl.when(pl.program_id(2) == 0)
    def _():
        acc_ref[...] = jnp.zeros_like(acc_ref)

    acc_ref[...] += jnp.dot(x_ref[...], w_ref[...],
                            preferred_element_type=jnp.float32)

    @pl.when(pl.program_id(2) == pl.num_programs(2) - 1)
    def _():
        o_ref[...] = acc_ref[...].astype(o_ref.dtype)


def _ip_attn_kernel(x_ref, kv_ref, wq_ref, wo_ref, bo_ref, o_ref,
                    q_buf, out_buf, *, heads, dim_head, n_ctx, ip_scale):
    """One query tile of one batch: fused q-projection, merged context +
    ip-context attention over a token-concatenated KV slab, fused to_out."""
    inner = heads * dim_head

    # Fused to_q.  sm_scale is folded into wq at init -> no per-tile scaling.
    q_buf[...] = jnp.dot(x_ref[0], wq_ref[...],
                         preferred_element_type=jnp.float32).astype(q_buf.dtype)

    kv = kv_ref[0]                                   # (Mtot, 2*inner) = [K | V]
    m_tot = kv.shape[0]
    # Token segmentation: [0, n_ctx) is text context, the rest are IP tokens.
    col = lax.broadcasted_iota(jnp.int32, (1, m_tot), 1)
    is_ctx = col < n_ctx
    neg = jnp.float32(-1e30)

    for h in range(heads):                           # static unroll over heads
        lo = h * dim_head
        # TODO(synk): per-head lane slices at non-128 offsets cost an XLU
        # re-layout copy each; a head-major KV slab would remove them if this
        # shows up hot in the bundle dump.
        qh = q_buf[:, lo:lo + dim_head]                      # (tq, dh)
        kh = kv[:, lo:lo + dim_head]                         # (Mtot, dh)
        vh = kv[:, inner + lo:inner + lo + dim_head]         # (Mtot, dh)

        # One score dot over the combined (context + ip) tokens, fp32 acc.
        s = lax.dot_general(qh, kh, (((1,), (1,)), ((), ())),
                            preferred_element_type=jnp.float32)  # (tq, Mtot)
        # Segmented softmax statistics (fp32) via masked max/sum.
        m_c = jnp.max(jnp.where(is_ctx, s, neg), axis=-1, keepdims=True)
        m_i = jnp.max(jnp.where(is_ctx, neg, s), axis=-1, keepdims=True)
        p = jnp.exp(s - jnp.where(is_ctx, m_c, m_i))
        l_c = jnp.sum(jnp.where(is_ctx, p, 0.0), axis=-1, keepdims=True)
        l_i = jnp.sum(jnp.where(is_ctx, 0.0, p), axis=-1, keepdims=True)
        r_c = pl.reciprocal(l_c, approx=True)
        # out = (Pc@V)/l_c + ip_scale*(Pi@Vi)/l_i
        #     = r_c * ([Pc | (ip_scale*l_c/l_i)*Pi] @ [V ; Vi])   -> ONE fat dot.
        coef = (ip_scale * l_c) * pl.reciprocal(l_i, approx=True)  # (tq, 1)
        p = jnp.where(is_ctx, p, p * coef)
        oh = jnp.dot(p.astype(kv.dtype), vh,
                     preferred_element_type=jnp.float32)             # (tq, dh)
        # Per-head store into the VMEM slab: bounds live ranges, no head concat.
        out_buf[:, lo:lo + dim_head] = (oh * r_c).astype(out_buf.dtype)

    # Fused to_out: (tq, inner) @ (inner, query_dim) + bias, fp32 accumulate.
    y = jnp.dot(out_buf[...], wo_ref[...], preferred_element_type=jnp.float32)
    o_ref[0] = (y + bo_ref[...]).astype(o_ref.dtype)


# ------------------------------ JAX wrappers ---------------------------------

def pallas_linear(x2d, w, out_dtype=None):
    """Tiled x2d @ w (no bias).  x2d: (T, Din), w: (Din, Dout)."""
    T, Din = x2d.shape
    Dout = w.shape[1]
    out_dtype = x2d.dtype if out_dtype is None else out_dtype
    itemsize = jnp.dtype(x2d.dtype).itemsize
    sub = _sublane_multiple(x2d.dtype)

    # Row tile: full T when small, else 256 rows; ragged remainder is handled
    # by zero-padding (padded rows sliced off below) instead of tiny tiles.
    if T <= 256:
        tm, Tp = T, T
    else:
        tm = 256
        Tp = pl.cdiv(T, tm) * tm
    xp = x2d if Tp == T else jnp.pad(x2d, ((0, Tp - T), (0, 0)))

    tn = Dout if Dout <= 256 else _pick_tile(Dout, 256, 128)

    # Prefer the full-Din contraction: no k grid axis, no fp32 accumulator
    # scratch, no init/finalize predication.
    full_k_bytes = (tm * Din + Din * tn) * itemsize * 2     # double-buffered
    tk = Din if full_k_bytes <= (12 << 20) else _pick_tile(Din, 512, 128)
    del sub  # sublane multiple only matters when tm < full T (tm=256 is fine)

    if tk == Din:
        out = pl.pallas_call(
            _linear_kernel,
            out_shape=jax.ShapeDtypeStruct((Tp, Dout), out_dtype),
            grid_spec=pltpu.PrefetchScalarGridSpec(
                num_scalar_prefetch=0,
                grid=(Tp // tm, Dout // tn),
                in_specs=[pl.BlockSpec((tm, Din), lambda i, j: (i, 0)),
                          pl.BlockSpec((Din, tn), lambda i, j: (0, j))],
                out_specs=pl.BlockSpec((tm, tn), lambda i, j: (i, j)),
            ),
            compiler_params=pltpu.CompilerParams(
                dimension_semantics=("parallel", "parallel")),
        )(xp, w)
    else:
        out = pl.pallas_call(
            _linear_acc_kernel,
            out_shape=jax.ShapeDtypeStruct((Tp, Dout), out_dtype),
            grid_spec=pltpu.PrefetchScalarGridSpec(
                num_scalar_prefetch=0,
                grid=(Tp // tm, Dout // tn, Din // tk),       # reduction last
                in_specs=[pl.BlockSpec((tm, tk), lambda i, j, k: (i, k)),
                          pl.BlockSpec((tk, tn), lambda i, j, k: (k, j))],
                out_specs=pl.BlockSpec((tm, tn), lambda i, j, k: (i, j)),
                scratch_shapes=[pltpu.VMEM((tm, tn), jnp.float32)],
            ),
            compiler_params=pltpu.CompilerParams(
                dimension_semantics=("parallel", "parallel", "arbitrary")),
        )(xp, w)
    return out if Tp == T else out[:T]


def pallas_ip_attention(x, kv_all, w_q, w_o, b_o, *, heads, dim_head,
                        n_ctx, ip_scale, out_dtype):
    """x: (B, N, Dq); kv_all: (B, M+Mi, 2*inner) with [K|V] columns and
    context tokens first; w_q: (Dq, inner) (sm_scale folded in);
    w_o: (inner, Dq); b_o: (1, Dq) fp32."""
    B, N, Dq = x.shape
    Mtot = kv_all.shape[1]
    inner = heads * dim_head
    sub = _sublane_multiple(x.dtype)
    tq = _pick_tile(N, _query_tile_pref(), sub)
    # TODO(synk): for very long self-attention contexts (context=None => M=N),
    # add a KV grid axis with flash-style online-softmax accumulators instead
    # of keeping the whole (Mtot, 2*inner) slab resident per batch.

    itemsize = jnp.dtype(x.dtype).itemsize
    out_itemsize = jnp.dtype(out_dtype).itemsize
    need = (2 * tq * Dq * itemsize                # x tiles (double buffered)
            + 2 * tq * Dq * out_itemsize          # out tiles
            + 2 * Mtot * 2 * inner * itemsize     # resident KV slab buffers
            + 2 * 2 * Dq * inner * itemsize       # w_q + w_o
            + 2 * Dq * 4                          # bias
            + 2 * tq * inner * itemsize)          # q/out VMEM scratch slabs
    cp = dict(dimension_semantics=("parallel", "parallel"))
    if need > (12 << 20):
        # Above the most conservative scoped default; cap at v7x's 64 MiB TC.
        cp["vmem_limit_bytes"] = int(min(need + (8 << 20), 64 << 20))

    kern = functools.partial(_ip_attn_kernel, heads=heads, dim_head=dim_head,
                             n_ctx=n_ctx, ip_scale=ip_scale)
    return pl.pallas_call(
        kern,
        out_shape=jax.ShapeDtypeStruct((B, N, Dq), out_dtype),
        grid_spec=pltpu.PrefetchScalarGridSpec(
            num_scalar_prefetch=0,
            grid=(B, N // tq),
            in_specs=[
                pl.BlockSpec((1, tq, Dq), lambda b, i: (b, i, 0)),
                # KV slab ignores the query-tile index -> resident per batch.
                pl.BlockSpec((1, Mtot, 2 * inner), lambda b, i: (b, 0, 0)),
                # Weights / bias: resident for the whole grid.
                pl.BlockSpec((Dq, inner), lambda b, i: (0, 0)),
                pl.BlockSpec((inner, Dq), lambda b, i: (0, 0)),
                pl.BlockSpec((1, Dq), lambda b, i: (0, 0)),
            ],
            out_specs=pl.BlockSpec((1, tq, Dq), lambda b, i: (b, i, 0)),
            scratch_shapes=[pltpu.VMEM((tq, inner), x.dtype),   # fused-q slab
                            pltpu.VMEM((tq, inner), x.dtype)],  # head outputs
        ),
        compiler_params=pltpu.CompilerParams(**cp),
    )(x, kv_all, w_q, w_o, b_o)


class IPAttentionPallas:
    """JAX/Pallas port of refnet IPAttention (Dropout(p=0) -> identity)."""

    def __init__(self, query_dim, context_dim, heads=8, dim_head=64,
                 dropout=0.0, key=None, param_dtype=jnp.float32,
                 compute_dtype=jnp.bfloat16):
        inner_dim = heads * dim_head
        self.heads = heads
        self.dim_head = dim_head
        self.sm_scale = dim_head ** (-0.5)
        self.compute_dtype = compute_dtype

        key = jax.random.PRNGKey(42) if key is None else key
        ks = jax.random.split(key, 7)

        def init_w(k, fan_in, fan_out):
            bound = 1.0 / math.sqrt(fan_in)
            return jax.random.uniform(k, (fan_in, fan_out), param_dtype,
                                      -bound, bound)

        # Canonical fp32 params (stored as (in, out): x @ W == x @ torch_W.T).
        self.w_q = init_w(ks[0], query_dim, inner_dim)
        self.w_k = init_w(ks[1], context_dim, inner_dim)
        self.w_v = init_w(ks[2], context_dim, inner_dim)
        self.ip_w_k = init_w(ks[3], context_dim, inner_dim)
        self.ip_w_v = init_w(ks[4], context_dim, inner_dim)
        self.w_o = init_w(ks[5], inner_dim, query_dim)
        bound = 1.0 / math.sqrt(inner_dim)
        self.b_o = jax.random.uniform(ks[6], (query_dim,), param_dtype,
                                      -bound, bound)

        # Kernel-side copies: bf16 MXU operands, sm_scale folded into w_q,
        # fused [K|V] projection weights, fp32 bias row.
        cd = compute_dtype
        self.w_q_scaled = (self.w_q * self.sm_scale).astype(cd)
        self.w_kv = jnp.concatenate([self.w_k, self.w_v], axis=1).astype(cd)
        self.ip_w_kv = jnp.concatenate([self.ip_w_k, self.ip_w_v],
                                       axis=1).astype(cd)
        self.w_o_c = self.w_o.astype(cd)
        self.b_o2d = self.b_o.reshape(1, -1).astype(jnp.float32)

    def __call__(self, x, context=None, ip_context=None, mask=None, scale=1.0):
        if mask is not None:
            raise NotImplementedError  # matches IPAttention.forward
        assert ip_context is not None, "ip_context is required"
        B, N, Dq = x.shape
        ctx = x if context is None else context
        M = ctx.shape[1]
        Mi = ip_context.shape[1]
        inner = self.heads * self.dim_head
        cd = self.compute_dtype

        # Fused K/V (and ip_K/ip_V) projections -> (tokens, 2*inner) slabs.
        kv = pallas_linear(ctx.reshape(B * M, -1).astype(cd), self.w_kv)
        ip_kv = pallas_linear(ip_context.reshape(B * Mi, -1).astype(cd),
                              self.ip_w_kv)
        # Stack context + ip tokens: one resident KV slab per batch.
        kv_all = jnp.concatenate(
            [kv.reshape(B, M, 2 * inner), ip_kv.reshape(B, Mi, 2 * inner)],
            axis=1)                                       # (B, M+Mi, 2*inner)

        # Fused to_q + attention + to_out.
        out = pallas_ip_attention(
            x.astype(cd), kv_all, self.w_q_scaled, self.w_o_c, self.b_o2d,
            heads=self.heads, dim_head=self.dim_head, n_ctx=M,
            ip_scale=float(scale), out_dtype=x.dtype)     # (B, N, Dq)
        return out


# --------------------------------- main --------------------------------------

if __name__ == "__main__":
    B, N, M, Mi = 2, 16, 8, 8
    query_dim, context_dim = 32, 32
    heads, dim_head = 4, 16
    ip_scale = 0.5

    key = jax.random.PRNGKey(0)
    kx, kc, ki = jax.random.split(key, 3)
    x = jax.random.normal(kx, (B, N, query_dim), jnp.float32)
    context = jax.random.normal(kc, (B, M, context_dim), jnp.float32)
    ip_context = jax.random.normal(ki, (B, Mi, context_dim), jnp.float32)

    module = IPAttentionPallas(query_dim, context_dim, heads=heads,
                               dim_head=dim_head, key=jax.random.PRNGKey(1))

    out = module(x, context=context, ip_context=ip_context, scale=ip_scale)
    out = jax.block_until_ready(out)

    # Pure-JAX fp32 reference of the same math (exact softmax normalization).
    def ref_forward(x, ctx, ipc, scale):
        inner = heads * dim_head
        sm = dim_head ** (-0.5)

        def proj(t, w):
            return jnp.einsum("bnc,cd->bnd", t, w)

        def split_heads(t):
            b, n, _ = t.shape
            return t.reshape(b, n, heads, dim_head).transpose(0, 2, 1, 3)

        qh = split_heads(proj(x, module.w_q))
        kh = split_heads(proj(ctx, module.w_k))
        vh = split_heads(proj(ctx, module.w_v))
        ikh = split_heads(proj(ipc, module.ip_w_k))
        ivh = split_heads(proj(ipc, module.ip_w_v))

        def attn(q, k, v):
            s = jnp.einsum("bhnd,bhmd->bhnm", q, k) * sm
            p = jax.nn.softmax(s, axis=-1)
            return jnp.einsum("bhnm,bhmd->bhnd", p, v)

        o = attn(qh, kh, vh) + scale * attn(qh, ikh, ivh)
        o = o.transpose(0, 2, 1, 3).reshape(B, N, inner)
        return jnp.einsum("bnd,dc->bnc", o, module.w_o) + module.b_o

    ref = ref_forward(x, context, ip_context, ip_scale)
    err = float(jnp.max(jnp.abs(out - ref)))
    # Tolerance covers bf16 MXU operands + EUP approx reciprocal normalization.
    assert jnp.allclose(out, ref, atol=3e-2, rtol=3e-2), f"max abs err {err}"

    print("KERNEL_OK")
</pallas_src>

<mosaic_0001>
module attributes {stable_mosaic.version = 11 : i64} {
  func.func @_linear_kernel(%arg0: i32, %arg1: i32, %arg2: memref<16x32xbf16, #tpu.memory_space<vmem>>, %arg3: memref<32x128xbf16, #tpu.memory_space<vmem>>, %arg4: memref<16x128xbf16, #tpu.memory_space<vmem>>) attributes {dimension_semantics = [#tpu.dimension_semantics<parallel>, #tpu.dimension_semantics<parallel>], iteration_bounds = array<i64: 1, 1>, scalar_prefetch = 0 : i64, scratch_operands = 0 : i64, tpu.core_type = #tpu.core_type<tc>, window_params = [{transform_indices = @transform_0, window_bounds = array<i64: 16, 32>}, {transform_indices = @transform_1, window_bounds = array<i64: 32, 128>}, {transform_indices = @transform_2, window_bounds = array<i64: 16, 128>}]} {
    %c0 = arith.constant 0 : index
    %c0_0 = arith.constant 0 : index
    %0 = vector.load %arg2[%c0, %c0_0] : memref<16x32xbf16, #tpu.memory_space<vmem>>, vector<16x32xbf16>
    %c0_1 = arith.constant 0 : index
    %c0_2 = arith.constant 0 : index
    %1 = vector.load %arg3[%c0_1, %c0_2] : memref<32x128xbf16, #tpu.memory_space<vmem>>, vector<32x128xbf16>
    %cst = arith.constant dense<0.000000e+00> : vector<16x128xf32>
    %2 = tpu.matmul %0, %1, %cst {dimension_numbers = #tpu.dot_dimension_numbers<[1], [0], [0], [1], [0, 0, 1, 1], [], []>} : vector<16x32xbf16>, vector<32x128xbf16>, vector<16x128xf32> -> vector<16x128xf32>
    %3 = arith.truncf %2 : vector<16x128xf32> to vector<16x128xbf16>
    %c0_3 = arith.constant 0 : index
    %c0_4 = arith.constant 0 : index
    %4 = vector.load %arg4[%c0_3, %c0_4] : memref<16x128xbf16, #tpu.memory_space<vmem>>, vector<16x128xbf16>
    tpu.vector_store %arg4[%c0_3, %c0_4], %3 {strides = array<i32>} : memref<16x128xbf16, #tpu.memory_space<vmem>>, vector<16x128xbf16>,
    return
  }
  func.func @transform_0(%arg0: i32, %arg1: i32) -> (i32, i32) {
    %c0_i32 = arith.constant 0 : i32
    %c0_i32_0 = arith.constant 0 : i32
    return %arg0, %c0_i32 : i32, i32
  }
  func.func @transform_1(%arg0: i32, %arg1: i32) -> (i32, i32) {
    %c0_i32 = arith.constant 0 : i32
    %c0_i32_0 = arith.constant 0 : i32
    return %c0_i32, %arg1 : i32, i32
  }
  func.func @transform_2(%arg0: i32, %arg1: i32) -> (i32, i32) {
    %c0_i32 = arith.constant 0 : i32
    return %arg0, %arg1 : i32, i32
  }
}

</mosaic_0001>

<llo_original>
// kernel: tpu_custom_call.1
$region0: #{tpu_custom_call.1}
  #allocation0 [shape = 'u32[]', space=smem, size = 0x4, offset = 0x4, fixed_abs, tag = 'smem constant byte address 0x4 - core index']
  #allocation1 [shape = 'u32[144,128]{1,0:T(1,128)}', space=vmem, size = 0x12000, scoped, tag = 'internal scratch']
  %s0 = inlined_call_operand.hbm [shape: bf16[16,32], index: 0, kind: input, shape index: {}]
  %s1 = inlined_call_operand.hbm [shape: bf16[32,128], index: 1, kind: input, shape index: {}]
  %s2 = inlined_call_operand.hbm [shape: bf16[16,128], index: 2, kind: output, shape index: {}]
  %s3 = sld [smem:[#allocation0]]
  $region26: #{tpu_custom_call.1} parent=0
    _
  %s5 = ssub.s32 1, %s3
  %s6 = scalar_select 0, %s5, %s3
  $region1: #{tpu_custom_call.1} parent=0
    #allocation2 [shape = 'u8[4096]{0}', space=vmem, size = 0x1000, scoped, tag = 'input window, operand 0, single buffered']
    #allocation3 [shape = 's32[1]{0}', space=sflag, size = 0x4, scoped, tag = 'scoped memory for tpu_custom_call.1']
    #allocation4 [shape = 's32[1]{0}', space=sflag, size = 0x4, scoped, tag = 'scoped memory for tpu_custom_call.1']
    #allocation5 [shape = 'u8[8192]{0}', space=vmem, size = 0x2000, scoped, tag = 'input window, operand 1, single buffered']
    #allocation6 [shape = 's32[1]{0}', space=sflag, size = 0x4, scoped, tag = 'scoped memory for tpu_custom_call.1']
    #allocation7 [shape = 'u8[4096]{0}', space=vmem, size = 0x1000, scoped, tag = 'output window, operand 0, single buffered']
    %7 = vsyncpa [#allocation3], 0
    %8 = vsyncpa [#allocation6], 0
    %9 = vsyncpa [#allocation4], 0
    // Predicated region
    $region2: #{tpu_custom_call.1} parent=1 // pred_check
      _
    $region3: #{tpu_custom_call.1} parent=1 // pred_check_branch
      %11 = sbr.rel (0) target = $region5
    $region4: #{tpu_custom_call.1} parent=1 // pred_region
      %s13 = ssub.s32 128, 128
      %14 = vsyncadd [#allocation3], %s13
      %s15 = sshll.u32 [#allocation2], 4
      %s16 = int_to_ptr.vmem [resolvable:$true] %s15
      %21 = dma.hbm_to_vmem [thread:$0]  %s0, 128, %s16, [#allocation3], 64, 64, 4
    $region5: #{tpu_custom_call.1} parent=1 // pred_fallthru
      _
    // Predicated region
    $region6: #{tpu_custom_call.1} parent=1 // pred_check
      _
    $region7: #{tpu_custom_call.1} parent=1 // pred_check_branch
      %23 = sbr.rel (0) target = $region9
    $region8: #{tpu_custom_call.1} parent=1 // pred_region
      %s25 = ssub.s32 256, 256
      %26 = vsyncadd [#allocation6], %s25
      %s27 = sshll.u32 [#allocation5], 4
      %s28 = int_to_ptr.vmem [resolvable:$true] %s27
      %33 = dma.hbm_to_vmem [thread:$0]  %s1, 256, %s28, [#allocation6], 64, 64, 4
    $region9: #{tpu_custom_call.1} parent=1 // pred_fallthru
      _
    // Predicated region
    $region10: #{tpu_custom_call.1} parent=1 // pred_check
      _
    $region11: #{tpu_custom_call.1} parent=1 // pred_check_branch
      %35 = sbr.rel (0) target = $region13
    $region12: #{tpu_custom_call.1} parent=1 // pred_region
      %36 = dma.done [#allocation3], 128
    $region13: #{tpu_custom_call.1} parent=1 // pred_fallthru
      _
    // Predicated region
    $region14: #{tpu_custom_call.1} parent=1 // pred_check
      _
    $region15: #{tpu_custom_call.1} parent=1 // pred_check_branch
      %38 = sbr.rel (0) target = $region17
    $region16: #{tpu_custom_call.1} parent=1 // pred_region
      %39 = dma.done [#allocation6], 256
    $region17: #{tpu_custom_call.1} parent=1 // pred_fallthru
      _
    %v41 = vld [vmem:[#allocation2] sm:$0xf]
    %v42 = vld [vmem:[#allocation2 + $0x4] sm:$0xf]
    %v43 = vld [vmem:[#allocation5] sm:$0xf]
    %v44 = vld [vmem:[#allocation5 + $0x4] sm:$0xf]
    %v45 = vld [vmem:[#allocation5 + $0x8] sm:$0xf]
    %v46 = vld [vmem:[#allocation5 + $0xc] sm:$0xf]
    %v49 = vunpack.c.l.b16 %v41
    %v50 = vunpack.c.l.b16 %v42
    %v51 = vpack.c.b16 %v50, %v49
    %v56 = vunpack.c.l.b16 %v43
    %v57 = vunpack.c.l.b16 %v44
    %v58 = vunpack.c.l.b16 %v45
    %v59 = vunpack.c.l.b16 %v46
    %v60 = vpack.c.b16 %v57, %v56
    %v61 = vpack.c.b16 %v59, %v58
    %vm64 = vcmask 261120
    %v66 = vsel %vm64, %v51, 0
    %68 = vmatprep.subr.bf16.mxu0 0
    %69 = vmatpush1.bf16.msra.mxu0 %v60
    %70 = vmatprep.subr.bf16.mxu0 0
    %71 = vmatpush1.bf16.msra.mxu0 %v61
    %72 = vmatprep.subr.bf16.mxu0 0
    %73 = vmatpush1.bf16.msra.mxu0 0
    %74 = vmatprep.subr.bf16.mxu0 0
    %75 = vmatpush1.bf16.msra.mxu0 0
    %76 = vmatprep.subr.bf16.mxu0 0
    %77 = vmatpush1.bf16.msra.mxu0 0
    %78 = vmatprep.subr.bf16.mxu0 0
    %79 = vmatpush1.bf16.msra.mxu0 0
    %80 = vmatprep.subr.bf16.mxu0 0
    %81 = vmatpush1.bf16.msra.mxu0 0
    %82 = vmatprep.subr.bf16.mxu0 0
    %83 = vmatpush1.bf16.msra.mxu0 0
    %84 = vmatprep.subr.bf16.mxu0 0
    %85 = vmatpush1.bf16.msra.mxu0 0
    %86 = vmatprep.subr.bf16.mxu0 0
    %87 = vmatpush1.bf16.msra.mxu0 0
    %88 = vmatprep.subr.bf16.mxu0 0
    %89 = vmatpush1.bf16.msra.mxu0 0
    %90 = vmatprep.subr.bf16.mxu0 0
    %91 = vmatpush1.bf16.msra.mxu0 0
    %92 = vmatprep.subr.bf16.mxu0 0
    %93 = vmatpush1.bf16.msra.mxu0 0
    %94 = vmatprep.subr.bf16.mxu0 0
    %95 = vmatpush1.bf16.msra.mxu0 0
    %96 = vmatprep.subr.bf16.mxu0 0
    %97 = vmatpush1.bf16.msra.mxu0 0
    %98 = vmatprep.subr.bf16.mxu0 0
    %99 = vmatpush1.bf16.msra.mxu0 0
    %100 = vmatprep.mubr.bf16.mxu0 0
    %101 = vmatmul.mubr.bf16.gmra.mrb[0].mxu0 %v66
    %v102 = vpop.f32.mrb[0].mxu0
    %v103 = vadd.f32 0.0, %v102
    %v104 = vpop.f32.mrb[0].mxu0
    %v105 = vpop.f32.mrb[0].mxu0
    %v106 = vadd.f32 0.0, %v105
    %v107 = vpop.f32.mrb[0].mxu0
    %108 = vdwg.mxu0
    %v109 = vpack.c.bf16 %v106, %v103
    %v111 = vunpack.c.l.b16 %v109
    %v112 = vunpack.c.h.b16 %v109
    %v113 = vpack.c.b16 %v111, %v111
    %v114 = vpack.c.b16 %v112, %v112
    %117 = vst [vmem:[#allocation7] sm:$0xf] %v113
    %118 = vst [vmem:[#allocation7 + $0x4] sm:$0xf] %v114
    // Predicated region
    $region18: #{tpu_custom_call.1} parent=1 // pred_check
      _
    $region19: #{tpu_custom_call.1} parent=1 // pred_check_branch
      %120 = sbr.rel (0) target = $region21
    $region20: #{tpu_custom_call.1} parent=1 // pred_region
      %s122 = ssub.s32 128, 128
      %123 = vsyncadd [#allocation4], %s122
      %s124 = sshll.u32 [#allocation7], 4
      %s125 = int_to_ptr.vmem [resolvable:$true] %s124
      %130 = dma.vmem_to_hbm [thread:$0]  %s125, 128, %s2, [#allocation4], 64, 64, 4
    $region21: #{tpu_custom_call.1} parent=1 // pred_fallthru
      _
    // Predicated region
    $region22: #{tpu_custom_call.1} parent=1 // pred_check
      _
    $region23: #{tpu_custom_call.1} parent=1 // pred_check_branch
      %132 = sbr.rel (0) target = $region25
    $region24: #{tpu_custom_call.1} parent=1 // pred_region
      %133 = dma.done [#allocation4], 128
    $region25: #{tpu_custom_call.1} parent=1 // pred_fallthru
      _
    %134 = vsyncpa [#allocation3], 1
    %135 = vsyncpa [#allocation6], 1
    %136 = vsyncpa [#allocation4], 1

</llo_original>
